<compile_context>
chip_gen: v7x
topology: tpu7x:2x2x1
jax: 0.10.0
libtpu: 0.0.40
codegen_flags: <defaults>
</compile_context>

<pallas_src>
import jax
import jax.numpy as jnp
import numpy as np
from jax import lax
from jax.experimental import pallas as pl
from jax.experimental.pallas import tpu as pltpu


def _make_eca_kernel(k, pad, inv_hw):
    """ECA kernel for (Bt, C, HW) blocks (channels on sublanes, HW on lanes)."""

    def kernel(w_ref, x_ref, o_ref):
        # w_ref: (k,) f32 in SMEM (Conv1d weight, no bias)
        # x_ref/o_ref: (Bt, C, HW) block in VMEM
        x = x_ref[...]

        # AdaptiveAvgPool2d(1): mean over the spatial (lane) axis, f32
        # accumulation; keepdims so the channel axis stays on sublanes.
        pooled = jnp.sum(x, axis=2, keepdims=True, dtype=jnp.float32) * inv_hw

        C = pooled.shape[1]

        # Conv1d(1, 1, k, padding=pad, bias=False) along the channel axis:
        #   y[c] = sum_j w[j] * pooled[c + j - pad]   (zero padded)
        # Runs on the tiny (Bt, C, 1) pooled tensor only.
        if pad > 0:
            zeros = jnp.zeros((pooled.shape[0], pad, 1), jnp.float32)
            padded = jnp.concatenate([zeros, pooled, zeros], axis=1)
        else:
            padded = pooled

        y = jnp.zeros_like(pooled)
        for j in range(k):  # static unroll; k is tiny (3 or 5)
            y = y + w_ref[j] * lax.slice_in_dim(padded, j, j + C, axis=1)

        gate = jax.nn.sigmoid(y)                       # (Bt, C, 1) f32

        # Big multiply in the input dtype; the gate is tiny so the cast is free.
        o_ref[...] = x * gate.astype(o_ref.dtype)

    return kernel


def _vmem_capacity_bytes():
    try:
        return int(pltpu.get_tpu_info().vmem_capacity_bytes)
    except Exception:
        return 128 * 1024 * 1024


def _choose_batch_tile(B, per_elem_vmem_bytes, target_bytes, min_steps):
    """Largest divisor of B whose block fits target, keeping >= min_steps steps."""
    req_steps = min(min_steps, B)
    best = 1
    for d in range(1, B + 1):
        if B % d:
            continue
        if d * per_elem_vmem_bytes > target_bytes:
            continue
        if (B // d) < req_steps:
            continue
        best = d
    return best


def eca_attention(x, conv_weight, *, donate_input=False):
    """x: (B, C, H, W); conv_weight: (k,) float32. Returns (B, C, H, W)."""
    B, C, H, W = x.shape
    HW = H * W
    k = int(conv_weight.shape[0])
    pad = (k - 1) // 2

    # Free contiguous reshape; kernel works on the NCHW-native (B, C, HW) view.
    x_in = x.reshape(B, C, HW)

    # --- block sizing: VMEM-padding aware, generation aware ---
    itemsize = jnp.dtype(x.dtype).itemsize
    sublane = 8 * max(1, 4 // itemsize)                 # 8 f32, 16 bf16, 32 i8
    c_pad = ((C + sublane - 1) // sublane) * sublane
    hw_pad = ((HW + 127) // 128) * 128
    per_elem_vmem = c_pad * hw_pad * itemsize           # real VMEM / batch elem

    vmem_cap = _vmem_capacity_bytes()
    block_cap = (3 * vmem_cap) // 16       # ~12 MiB on v7x, ~24 MiB on v5e/v6e
    target = min(8 * 1024 * 1024, block_cap)

    # >= 2 steps for DMA/compute overlap everywhere; on 64-MiB-VMEM chips
    # (v7x-style, 2 TensorCores) prefer >= 4 so each core still pipelines.
    min_steps = 4 if vmem_cap <= 64 * 1024 * 1024 else 2

    Bt = _choose_batch_tile(B, per_elem_vmem, target, min_steps)
    grid = (B // Bt,)
    block_shape = (Bt, C, HW)

    # Pipeline holds ~2x in + 2x out blocks; derive the scoped limit from the
    # actual block so the Bt=1 fallback can never silently exceed it.
    block_vmem = Bt * per_elem_vmem
    needed = 4 * block_vmem + 2 * 1024 * 1024
    vmem_limit = int(min(max(needed, 16 * 1024 * 1024), (7 * vmem_cap) // 8))

    kernel = _make_eca_kernel(k, pad, 1.0 / float(HW))

    out = pl.pallas_call(
        kernel,
        out_shape=jax.ShapeDtypeStruct(x_in.shape, x.dtype),
        grid_spec=pltpu.PrefetchScalarGridSpec(
            num_scalar_prefetch=0,
            grid=grid,
            in_specs=[
                pl.BlockSpec(memory_space=pltpu.MemorySpace.SMEM),   # weight
                pl.BlockSpec(block_shape, lambda b: (b, 0, 0)),      # x block
            ],
            out_specs=pl.BlockSpec(block_shape, lambda b: (b, 0, 0)),
        ),
        compiler_params=pltpu.CompilerParams(
            dimension_semantics=("parallel",),
            vmem_limit_bytes=vmem_limit,
        ),
        # Optional in-place update; x_in is a free reshape of x, so the alias
        # now reaches the caller's buffer (fixes the transposed-temp issue).
        input_output_aliases=({1: 0} if donate_input else {}),
    )(conv_weight, x_in)

    return out.reshape(B, C, H, W)


def _reference(x, conv_weight):
    """Pure-JAX reference matching the PyTorch forward."""
    B, C, H, W = x.shape
    k = conv_weight.shape[0]
    pad = (k - 1) // 2
    pooled = jnp.mean(x, axis=(2, 3))                               # (B, C)
    padded = jnp.pad(pooled, ((0, 0), (pad, pad)))                  # (B, C+k-1)
    y = jnp.zeros_like(pooled)
    for j in range(k):
        y = y + conv_weight[j] * padded[:, j:j + C]
    gate = jax.nn.sigmoid(y)[:, :, None, None]
    return x * gate


if __name__ == "__main__":
    key = jax.random.PRNGKey(0)
    kx, kw, kx2 = jax.random.split(key, 3)

    k_size = 5
    # Deterministic Conv1d(1, 1, k_size, bias=False) weight init
    # (PyTorch-style uniform in [-1/sqrt(k), 1/sqrt(k)]).
    bound = 1.0 / np.sqrt(k_size)
    conv_weight = jax.random.uniform(
        kw, (k_size,), dtype=jnp.float32, minval=-bound, maxval=bound)

    # --- primary shape (HW = 256 lane-dense, tiny C exercises sublane pad) ---
    B, C, H, W = 2, 4, 16, 16
    x = jax.random.normal(kx, (B, C, H, W), dtype=jnp.float32)
    out = jax.block_until_ready(eca_attention(x, conv_weight))
    np.testing.assert_allclose(np.asarray(out),
                               np.asarray(_reference(x, conv_weight)),
                               rtol=1e-5, atol=1e-5)

    # --- secondary shape: real ECA-style C=128, HW=49 (non-128-multiple lanes,
    #     handled natively without any wrapper transpose) ---
    B2, C2, H2, W2 = 2, 128, 7, 7
    x2 = jax.random.normal(kx2, (B2, C2, H2, W2), dtype=jnp.float32)
    out2 = jax.block_until_ready(eca_attention(x2, conv_weight))
    np.testing.assert_allclose(np.asarray(out2),
                               np.asarray(_reference(x2, conv_weight)),
                               rtol=1e-5, atol=1e-5)

    print("KERNEL_OK")
</pallas_src>

<mosaic_0001>
module attributes {stable_mosaic.version = 11 : i64} {
  func.func @kernel(%arg0: i32, %arg1: memref<5xf32, #tpu.memory_space<smem>>, %arg2: memref<1x4x256xf32, #tpu.memory_space<vmem>>, %arg3: memref<1x4x256xf32, #tpu.memory_space<vmem>>) attributes {dimension_semantics = [#tpu.dimension_semantics<parallel>], iteration_bounds = array<i64: 2>, scalar_prefetch = 0 : i64, scratch_operands = 0 : i64, tpu.core_type = #tpu.core_type<tc>, window_params = [{transform_indices = @transform_0, window_bounds = array<i64: 5>}, {transform_indices = @transform_1, window_bounds = array<i64: 1, 4, 256>}, {transform_indices = @transform_2, window_bounds = array<i64: 1, 4, 256>}]} {
    %c0 = arith.constant 0 : index
    %c0_0 = arith.constant 0 : index
    %c0_1 = arith.constant 0 : index
    %0 = vector.load %arg2[%c0, %c0_0, %c0_1] : memref<1x4x256xf32, #tpu.memory_space<vmem>>, vector<1x4x256xf32>
    %cst = arith.constant dense<0.000000e+00> : vector<1x4xf32>
    %1 = vector.multi_reduction <add>, %0, %cst [2] : vector<1x4x256xf32> to vector<1x4xf32>
    %2 = vector.shape_cast %1 : vector<1x4xf32> to vector<1x4x1xf32>
    %cst_2 = arith.constant 3.906250e-03 : f32
    %3 = vector.broadcast %cst_2 : f32 to vector<1x4x1xf32>
    %4 = arith.mulf %2, %3 : vector<1x4x1xf32>
    %cst_3 = arith.constant 0.000000e+00 : f32
    %5 = vector.broadcast %cst_3 : f32 to vector<1x2x1xf32>
    %6 = tpu.concatenate %5, %4, %5 in 1 : vector<1x2x1xf32>, vector<1x4x1xf32>, vector<1x2x1xf32> -> vector<1x8x1xf32>
    %cst_4 = arith.constant 0.000000e+00 : f32
    %7 = vector.broadcast %cst_4 : f32 to vector<1x4x1xf32>
    %c0_5 = arith.constant 0 : index
    %8 = memref.load %arg1[%c0_5] : memref<5xf32, #tpu.memory_space<smem>>
    %9 = vector.extract_strided_slice %6 {offsets = [0, 0, 0], sizes = [1, 4, 1], strides = [1, 1, 1]} : vector<1x8x1xf32> to vector<1x4x1xf32>
    %10 = vector.broadcast %8 : f32 to vector<1x4x1xf32>
    %11 = arith.mulf %10, %9 : vector<1x4x1xf32>
    %12 = arith.addf %7, %11 : vector<1x4x1xf32>
    %c1 = arith.constant 1 : index
    %13 = memref.load %arg1[%c1] : memref<5xf32, #tpu.memory_space<smem>>
    %14 = vector.extract_strided_slice %6 {offsets = [0, 1, 0], sizes = [1, 4, 1], strides = [1, 1, 1]} : vector<1x8x1xf32> to vector<1x4x1xf32>
    %15 = vector.broadcast %13 : f32 to vector<1x4x1xf32>
    %16 = arith.mulf %15, %14 : vector<1x4x1xf32>
    %17 = arith.addf %12, %16 : vector<1x4x1xf32>
    %c2 = arith.constant 2 : index
    %18 = memref.load %arg1[%c2] : memref<5xf32, #tpu.memory_space<smem>>
    %19 = vector.extract_strided_slice %6 {offsets = [0, 2, 0], sizes = [1, 4, 1], strides = [1, 1, 1]} : vector<1x8x1xf32> to vector<1x4x1xf32>
    %20 = vector.broadcast %18 : f32 to vector<1x4x1xf32>
    %21 = arith.mulf %20, %19 : vector<1x4x1xf32>
    %22 = arith.addf %17, %21 : vector<1x4x1xf32>
    %c3 = arith.constant 3 : index
    %23 = memref.load %arg1[%c3] : memref<5xf32, #tpu.memory_space<smem>>
    %24 = vector.extract_strided_slice %6 {offsets = [0, 3, 0], sizes = [1, 4, 1], strides = [1, 1, 1]} : vector<1x8x1xf32> to vector<1x4x1xf32>
    %25 = vector.broadcast %23 : f32 to vector<1x4x1xf32>
    %26 = arith.mulf %25, %24 : vector<1x4x1xf32>
    %27 = arith.addf %22, %26 : vector<1x4x1xf32>
    %c4 = arith.constant 4 : index
    %28 = memref.load %arg1[%c4] : memref<5xf32, #tpu.memory_space<smem>>
    %29 = vector.extract_strided_slice %6 {offsets = [0, 4, 0], sizes = [1, 4, 1], strides = [1, 1, 1]} : vector<1x8x1xf32> to vector<1x4x1xf32>
    %30 = vector.broadcast %28 : f32 to vector<1x4x1xf32>
    %31 = arith.mulf %30, %29 : vector<1x4x1xf32>
    %32 = arith.addf %27, %31 : vector<1x4x1xf32>
    %33 = arith.negf %32 : vector<1x4x1xf32>
    %34 = math.exp %33 : vector<1x4x1xf32>
    %cst_6 = arith.constant 1.000000e+00 : f32
    %35 = vector.broadcast %cst_6 : f32 to vector<1x4x1xf32>
    %36 = arith.addf %35, %34 : vector<1x4x1xf32>
    %37 = arith.divf %35, %36 : vector<1x4x1xf32>
    %38 = vector.broadcast %37 : vector<1x4x1xf32> to vector<1x4x256xf32>
    %39 = arith.mulf %0, %38 : vector<1x4x256xf32>
    %c0_7 = arith.constant 0 : index
    %c0_8 = arith.constant 0 : index
    %c0_9 = arith.constant 0 : index
    %40 = vector.load %arg3[%c0_7, %c0_8, %c0_9] : memref<1x4x256xf32, #tpu.memory_space<vmem>>, vector<1x4x256xf32>
    tpu.vector_store %arg3[%c0_7, %c0_8, %c0_9], %39 {strides = array<i32>} : memref<1x4x256xf32, #tpu.memory_space<vmem>>, vector<1x4x256xf32>,
    return
  }
  func.func @transform_0(%arg0: i32) -> i32 {
    %c0_i32 = arith.constant 0 : i32
    %c0_i32_0 = arith.constant 0 : i32
    return %c0_i32 : i32
  }
  func.func @transform_1(%arg0: i32) -> (i32, i32, i32) {
    %c0_i32 = arith.constant 0 : i32
    %c0_i32_0 = arith.constant 0 : i32
    %c0_i32_1 = arith.constant 0 : i32
    return %arg0, %c0_i32, %c0_i32_0 : i32, i32, i32
  }
  func.func @transform_2(%arg0: i32) -> (i32, i32, i32) {
    %c0_i32 = arith.constant 0 : i32
    %c0_i32_0 = arith.constant 0 : i32
    %c0_i32_1 = arith.constant 0 : i32
    return %arg0, %c0_i32, %c0_i32_0 : i32, i32, i32
  }
}

</mosaic_0001>

<llo_original>
// kernel: tpu_custom_call.1
$region0: #{tpu_custom_call.1}
  #allocation0 [shape = 'u32[]', space=smem, size = 0x4, offset = 0x4, fixed_abs, tag = 'smem constant byte address 0x4 - core index']
  #allocation1 [shape = 'u32[144,128]{1,0:T(1,128)}', space=vmem, size = 0x12000, scoped, tag = 'internal scratch']
  %s0 = inlined_call_operand.hbm [shape: f32[5], index: 0, kind: input, shape index: {}]
  %s1 = inlined_call_operand.hbm [shape: f32[2,4,256], index: 1, kind: input, shape index: {}]
  %s2 = inlined_call_operand.hbm [shape: f32[2,4,256], index: 2, kind: output, shape index: {}]
  %s3 = sld [smem:[#allocation0]]
  $region49: #{tpu_custom_call.1} parent=0
    _
  %s5 = ssub.s32 1, %s3
  %s6 = scalar_select 0, %s5, %s3
  $region1: #{tpu_custom_call.1} parent=0
    #allocation2 [shape = 'u8[512]{0}', space=smem, size = 0x200, scoped, tag = 'input window, operand 0, single buffered']
    #allocation3 [shape = 's32[2]{0}', space=sflag, size = 0x8, scoped, tag = 'scoped memory for tpu_custom_call.1']
    #allocation4 [shape = 's32[2]{0}', space=sflag, size = 0x8, scoped, tag = 'scoped memory for tpu_custom_call.1']
    #allocation5 [shape = 's32[2]{0}', space=sflag, size = 0x8, scoped, tag = 'scoped memory for tpu_custom_call.1']
    #allocation6 [shape = 'u8[8192]{0}', space=vmem, size = 0x2000, scoped, tag = 'input window, operand 1']
    #allocation7 [shape = 'u8[8192]{0}', space=vmem, size = 0x2000, scoped, tag = 'output window, operand 0']
    %7 = vsyncpa [#allocation5], 0
    %8 = vsyncpa [#allocation3], 0
    %s9 = scalar_lea.sflag [#allocation3], 1
    %10 = vsyncpa %s9, 0
    %11 = vsyncpa [#allocation4], 0
    %s12 = scalar_lea.sflag [#allocation4], 1
    %13 = vsyncpa %s12, 0
    loop: start=0, step=1, limit=4
    $region2: #{tpu_custom_call.1} parent=1 // loop_pre_header
      _
    $region3: #{tpu_custom_call.1} parent=1 // loop_header
      %s15 = sphi 0, %s19
      %p16 = scmp.ge.s32.totalorder %s15, 4
      %s23 = sphi 0, %s23
      %s25 = sphi 0, %s23
      %s26 = sphi 0, %s25
      %s40 = sphi 0, %s26
      %s46 = sphi 0, %s48
      %s49 = sphi 0, %s46
      %s50 = sphi 0, %s49
      %s66 = sphi 0, %s50
      %s72 = sphi 0, %s74
      %s75 = sphi 0, %s72
      %s76 = sphi 0, %s75
      %s92 = sphi 0, %s76
    $region4: #{tpu_custom_call.1} parent=1 // loop_header_branch
      %18 = sbr.rel (%p16) target = $region8
    $region5: #{tpu_custom_call.1} parent=1 // loop_body
      %s20 = ssub.s32 %s15, 1
      %s21 = ssub.s32 %s15, 2
      %s22 = sadd.s32 %s15, 1
      %s24 = sadd.s32 %s23, 1
      %p27 = scmp.eq.s32.totalorder %s15, 1
      %p28 = scmp.ne.s32.totalorder %s23, %s25
      %p29 = scmp.eq.s32.totalorder %s15, 0
      %p30 = por %p28, %p29
      %p31 = scmp.ne.s32.totalorder %s23, %s25
      %p32 = scmp.eq.s32.totalorder %s20, 1
      %p33 = por %p31, %p32
      %p34 = scmp.ne.s32.totalorder %s25, %s26
      %p35 = scmp.eq.s32.totalorder %s20, 0
      %p36 = por %p34, %p35
      %p37 = scmp.ne.s32.totalorder %s25, %s26
      %p38 = scmp.eq.s32.totalorder %s21, 1
      %p39 = por %p37, %p38
      %p41 = scmp.ne.s32.totalorder %s26, %s40
      %p42 = scmp.eq.s32.totalorder %s21, 0
      %p43 = por %p41, %p42
      %s44 = ssub.s32 %s15, %s22
      %p45 = scmp.eq.s32.totalorder %s44, 0
      %s47 = sadd.s32 %s46, 1
      %s48 = scalar_select %p45, %s46, %s47
      %p51 = pneg %p45
      %p52 = scmp.eq.s32.totalorder %s15, 1
      %p53 = por %p51, %p52
      %p54 = scmp.ne.s32.totalorder %s46, %s49
      %p55 = scmp.eq.s32.totalorder %s15, 0
      %p56 = por %p54, %p55
      %p57 = scmp.ne.s32.totalorder %s46, %s49
      %p58 = scmp.eq.s32.totalorder %s20, 1
      %p59 = por %p57, %p58
      %p60 = scmp.ne.s32.totalorder %s49, %s50
      %p61 = scmp.eq.s32.totalorder %s20, 0
      %p62 = por %p60, %p61
      %p63 = scmp.ne.s32.totalorder %s49, %s50
      %p64 = scmp.eq.s32.totalorder %s21, 1
      %p65 = por %p63, %p64
      %p67 = scmp.ne.s32.totalorder %s50, %s66
      %p68 = scmp.eq.s32.totalorder %s21, 0
      %p69 = por %p67, %p68
      %s70 = ssub.s32 %s15, %s22
      %p71 = scmp.eq.s32.totalorder %s70, 0
      %s73 = sadd.s32 %s72, 1
      %s74 = scalar_select %p71, %s72, %s73
      %p77 = pneg %p71
      %p78 = scmp.eq.s32.totalorder %s15, 1
      %p79 = por %p77, %p78
      %p80 = scmp.ne.s32.totalorder %s72, %s75
      %p81 = scmp.eq.s32.totalorder %s15, 0
      %p82 = por %p80, %p81
      %p83 = scmp.ne.s32.totalorder %s72, %s75
      %p84 = scmp.eq.s32.totalorder %s20, 1
      %p85 = por %p83, %p84
      %p86 = scmp.ne.s32.totalorder %s75, %s76
      %p87 = scmp.eq.s32.totalorder %s20, 0
      %p88 = por %p86, %p87
      %p89 = scmp.ne.s32.totalorder %s75, %s76
      %p90 = scmp.eq.s32.totalorder %s21, 1
      %p91 = por %p89, %p90
      %p93 = scmp.ne.s32.totalorder %s76, %s92
      %p94 = scmp.eq.s32.totalorder %s21, 0
      %p95 = por %p93, %p94
      %p96 = scmp.le.s32.totalorder 1, %s15
      %p97 = scmp.lt.s32.totalorder %s15, 3
      %p98 = pnand %p96, %p97
      %p99 = pneg %p98
      // Predicated region
      $region9: #{tpu_custom_call.1} parent=5 // pred_check
        _
      $region10: #{tpu_custom_call.1} parent=5 // pred_check_branch
        %101 = sbr.rel (%p98) target = $region12
      $region11: #{tpu_custom_call.1} parent=5 // pred_region
        %s102 = ssub.s32 %s15, 1
        // Predicated region
        $region13: #{tpu_custom_call.1} parent=11 // pred_check
          %p103 = pneg %p36
        $region14: #{tpu_custom_call.1} parent=11 // pred_check_branch
          %105 = sbr.rel (%p103) target = $region16
        $region15: #{tpu_custom_call.1} parent=11 // pred_region
          %s107 = ssub.s32 16, 16
          %108 = vsyncadd [#allocation5], %s107
          %111 = dma.hbm_to_smem %s0, 16, [#allocation2], [#allocation5]
        $region16: #{tpu_custom_call.1} parent=11 // pred_fallthru
          _
      $region12: #{tpu_custom_call.1} parent=5 // pred_fallthru
        _
      %p112 = scmp.lt.s32.totalorder %s15, 2
      // Predicated region
      $region17: #{tpu_custom_call.1} parent=5 // pred_check
        %p113 = pneg %p112
      $region18: #{tpu_custom_call.1} parent=5 // pred_check_branch
        %115 = sbr.rel (%p113) target = $region20
      $region19: #{tpu_custom_call.1} parent=5 // pred_region
        // Predicated region
        $region21: #{tpu_custom_call.1} parent=19 // pred_check
          %p116 = pneg %p56
        $region22: #{tpu_custom_call.1} parent=19 // pred_check_branch
          %118 = sbr.rel (%p116) target = $region24
        $region23: #{tpu_custom_call.1} parent=19 // pred_region
          %s119 = sand.u32 %s46, 1
          %s120 = scalar_lea.sflag [#allocation3], %s119
          %s121 = sand.u32 %s46, 1
          %s122 = smul.addr %s121, 8
          %s123 = scalar_lea.vmem [#allocation6], %s122
          %s125 = ssub.s32 128, 128
          %126 = vsyncadd %s120, %s125
          %s127 = smul.addr %s15, 2
          %s128 = smul.addr %s127, 64
          %s129 = scalar_lea.hbm %s1, %s128
          %s131 = sshll.u32 %s123, 4
          %s132 = int_to_ptr.vmem [resolvable:$true] %s131
          %134 = dma.hbm_to_vmem [thread:$0]  %s129, 128, %s132, %s120
        $region24: #{tpu_custom_call.1} parent=19 // pred_fallthru
          _
      $region20: #{tpu_custom_call.1} parent=5 // pred_fallthru
        _
      %p135 = scmp.le.s32.totalorder 1, %s15
      %p136 = scmp.lt.s32.totalorder %s15, 3
      %p137 = pnand %p135, %p136
      %p138 = pneg %p137
      // Predicated region
      $region25: #{tpu_custom_call.1} parent=5 // pred_check
        _
      $region26: #{tpu_custom_call.1} parent=5 // pred_check_branch
        %140 = sbr.rel (%p137) target = $region28
      $region27: #{tpu_custom_call.1} parent=5 // pred_region
        %s141 = ssub.s32 %s15, 1
        // Predicated region
        $region29: #{tpu_custom_call.1} parent=27 // pred_check
          %p142 = pneg %p36
        $region30: #{tpu_custom_call.1} parent=27 // pred_check_branch
          %144 = sbr.rel (%p142) target = $region32
        $region31: #{tpu_custom_call.1} parent=27 // pred_region
          %145 = dma.done [#allocation5], 16
        $region32: #{tpu_custom_call.1} parent=27 // pred_fallthru
          _
        %s146 = sand.u32 %s49, 1
        %s147 = scalar_lea.sflag [#allocation3], %s146
        %s148 = sand.u32 %s49, 1
        %s149 = smul.addr %s148, 8
        %s150 = scalar_lea.vmem [#allocation6], %s149
        // Predicated region
        $region33: #{tpu_custom_call.1} parent=27 // pred_check
          %p151 = pneg %p62
        $region34: #{tpu_custom_call.1} parent=27 // pred_check_branch
          %153 = sbr.rel (%p151) target = $region36
        $region35: #{tpu_custom_call.1} parent=27 // pred_region
          %154 = dma.done %s147, 128
        $region36: #{tpu_custom_call.1} parent=27 // pred_fallthru
          _
        %155 = sfence
        %p156 = pneg %p36
        %p157 = pneg %p33
        %s158 = sand.u32 %s49, 1
        %s159 = scalar_lea.sflag [#allocation3], %s158
        %s160 = sand.u32 %s49, 1
        %s161 = smul.addr %s160, 8
        %s162 = scalar_lea.vmem [#allocation6], %s161
        %p163 = pneg %p62
        %p164 = pneg %p59
        %p165 = pneg %p88
        %p166 = pneg %p85
        %s167 = sand.u32 %s75, 1
        %s168 = scalar_lea.sflag [#allocation4], %s167
        %s169 = sand.u32 %s75, 1
        %s170 = smul.addr %s169, 8
        %s171 = scalar_lea.vmem [#allocation7], %s170
        %v172 = vld [vmem:[%s150] sm:$0xff]
        %v174 = vcombine.high %v172, %v172
        %vm176 = vcmask 1043456
        %v177 = vsel %vm176, %v172, 0.0
        %v178 = vsel %vm176, %v174, 0.0
        %v179 = vadd.f32 %v177, %v178
        %180 = vadd.xlane.f32.xlu0 %v179
        %v181 = vpop.xlane.xlu0 %180
        %v182 = vmul.f32 %v181, 0.00390625
        %v184 = vrot.slane %v182, 6
        %vm186 = vcmask 1041408
        %v187 = vsel %vm186, 0.0, %v184
        %vm188 = vcmask 1045504
        %v189 = vsel %vm188, %v187, 0.0
        %s190 = sld [smem:[#allocation2]]
        %v191 = vstv %s190
        %v192 = vmul.f32 %v191, %v189
        %v193 = vadd.f32 %v192, 0.0
        %s194 = sld [smem:[#allocation2 + $0x1]]
        %v195 = vstv %s194
        %v196 = vmul.f32 %v195, %v189
        %v198 = vrot.slane %v196, 1
        %v200 = vadd.f32 %v193, %v198
        %s201 = sld [smem:[#allocation2 + $0x2]]
        %v202 = vstv %s201
        %v203 = vmul.f32 %v202, %v189
        %v205 = vrot.slane %v203, 2
        %v207 = vadd.f32 %v200, %v205
        %s208 = sld [smem:[#allocation2 + $0x3]]
        %v209 = vstv %s208
        %v210 = vmul.f32 %v209, %v189
        %v212 = vrot.slane %v210, 3
        %v214 = vadd.f32 %v207, %v212
        %s215 = sld [smem:[#allocation2 + $0x4]]
        %v216 = vstv %s215
        %v217 = vmul.f32 %v216, %v189
        %v219 = vrot.slane %v217, 4
        %v221 = vadd.f32 %v214, %v219
        %v222 = vxor.u32 %v221, 2147483648
        %v223 = vmul.f32 %v222, 1.442695
        %v224 = vpow.pop %v223
        %v225 = vadd.f32 %v224, 1.0
        %v226 = vrcp.pop %v225
        %v227 = vmul.f32 1.0, %v226
        %229 = vset.pattern.permute.xlu0 0
        %230 = vperm.xlu0 %229, %v227
        %v231 = vpop.permute.xlu0 %230
        %v233 = vunpack.c.l.s4 839922192
        %v234 = vunpack.c.0.s8 %v233
        %v235 = vlaneseq
        %v236 = vshrl.u32 %v235, 7
        %v237 = vsub.s32 %v234, %v236
        %v238 = vrot.slane %v231, %v237
        %v240 = vmul.f32 %v172, %v238
        %241 = vst [vmem:[%s171] sm:$0xff] %v240
        %s242 = sand.u32 %s75, 1
        %s243 = scalar_lea.sflag [#allocation4], %s242
        %s244 = sand.u32 %s75, 1
        %s245 = smul.addr %s244, 8
        %s246 = scalar_lea.vmem [#allocation7], %s245
        // Predicated region
        $region37: #{tpu_custom_call.1} parent=27 // pred_check
          %p247 = pneg %p85
        $region38: #{tpu_custom_call.1} parent=27 // pred_check_branch
          %249 = sbr.rel (%p247) target = $region40
        $region39: #{tpu_custom_call.1} parent=27 // pred_region
          %s251 = ssub.s32 128, 128
          %252 = vsyncadd %s243, %s251
          %s253 = smul.addr %s20, 2
          %s254 = smul.addr %s253, 64
          %s255 = scalar_lea.hbm %s2, %s254
          %s257 = sshll.u32 %s246, 4
          %s258 = int_to_ptr.vmem [resolvable:$true] %s257
          %260 = dma.vmem_to_hbm [thread:$0]  %s258, 128, %s255, %s243
        $region40: #{tpu_custom_call.1} parent=27 // pred_fallthru
          _
      $region28: #{tpu_custom_call.1} parent=5 // pred_fallthru
        _
      %p261 = scmp.le.s32.totalorder 2, %s15
      // Predicated region
      $region41: #{tpu_custom_call.1} parent=5 // pred_check
        %p262 = pneg %p261
      $region42: #{tpu_custom_call.1} parent=5 // pred_check_branch
        %264 = sbr.rel (%p262) target = $region44
      $region43: #{tpu_custom_call.1} parent=5 // pred_region
        %s265 = ssub.s32 %s15, 2
        // Predicated region
        $region45: #{tpu_custom_call.1} parent=43 // pred_check
          %p266 = pneg %p91
        $region46: #{tpu_custom_call.1} parent=43 // pred_check_branch
          %268 = sbr.rel (%p266) target = $region48
        $region47: #{tpu_custom_call.1} parent=43 // pred_region
          %s269 = sand.u32 %s76, 1
          %s270 = scalar_lea.sflag [#allocation4], %s269
          %s271 = sand.u32 %s76, 1
          %s272 = smul.addr %s271, 8
          %s273 = scalar_lea.vmem [#allocation7], %s272
          %274 = dma.done %s270, 128
        $region48: #{tpu_custom_call.1} parent=43 // pred_fallthru
          _
      $region44: #{tpu_custom_call.1} parent=5 // pred_fallthru
        _
    $region6: #{tpu_custom_call.1} parent=1 // loop_footer
      %s19 = sadd.s32 1, %s15
    $region7: #{tpu_custom_call.1} parent=1 // loop_footer_branch
      %14 = sbr.rel target = $region3
    $region8: #{tpu_custom_call.1} parent=1 // loop_exit
      _
    %275 = vsyncpa [#allocation3], 1
    %s276 = scalar_lea.sflag [#allocation3], 1
    %277 = vsyncpa %s276, 1
    %278 = vsyncpa [#allocation4], 1
    %s279 = scalar_lea.sflag [#allocation4], 1
    %280 = vsyncpa %s279, 1
    %281 = vsyncpa [#allocation5], 1
    %s282 = scalar_lea.sflag [#allocation5], 1
    %283 = vsyncpa %s282, 1

</llo_original>
